<compile_context>
chip_gen: v7x
topology: tpu7x:2x2x1
jax: 0.10.0
libtpu: 0.0.40
codegen_flags: <defaults>
</compile_context>

<pallas_src>
import jax
import jax.numpy as jnp
from jax import lax
from jax.experimental import pallas as pl
from jax.experimental.pallas import tpu as pltpu

BN_EPS = 1e-5


def _vmem_limit_bytes(working_set_bytes: int) -> int:
    """Generation-aware VMEM cap: what the blocks need (+ headroom for
    compiler-internal scratch), clamped to 75% of this chip's physical VMEM
    (64 MiB on v7x, 128 MiB on v5e/v6e)."""
    cap = 64 * 1024 * 1024  # conservative fallback = v7x per-core VMEM
    try:
        cap = int(pltpu.get_tpu_info().vmem_capacity_bytes)
    except Exception:
        pass
    want = int(working_set_bytes) + (12 << 20)
    return int(min(max(want, 16 << 20), (cap * 3) // 4))


def _bn1d_train(h, gamma, beta):
    # PyTorch BatchNorm1d in training mode: batch mean, *biased* variance.
    # lax.rsqrt lands on the EUP slot (free relative to VALU).
    mean = jnp.mean(h, axis=0, keepdims=True)
    var = jnp.mean((h - mean) ** 2, axis=0, keepdims=True)
    return gamma * (h - mean) * lax.rsqrt(var + BN_EPS) + beta


# ----------------------------------------------------------------------------
# Encoder stand-in: y_v = x_v @ We + be for both views v in one tiled call.
# x arrives f32 (no wrapper cast pass); bf16 cast happens on the VPU; output
# is bf16 (what the head consumes).  The weight tile is shared by both views.
# ----------------------------------------------------------------------------
def _encoder_kernel_fused_k(x1_ref, x2_ref, w_ref, b_ref, y_ref):
    # Fast path: whole K resident -> no accumulator, no K grid axis.
    w = w_ref[...]
    b = b_ref[...]
    y1 = jnp.dot(x1_ref[...].astype(jnp.bfloat16), w,
                 preferred_element_type=jnp.float32)
    y2 = jnp.dot(x2_ref[...].astype(jnp.bfloat16), w,
                 preferred_element_type=jnp.float32)
    y_ref[0] = (y1 + b).astype(y_ref.dtype)
    y_ref[1] = (y2 + b).astype(y_ref.dtype)


def _encoder_kernel_tiled_k(x1_ref, x2_ref, w_ref, b_ref, y_ref, acc_ref):
    # General path: K tiled; f32 accumulator scratch (output is bf16).
    k = pl.program_id(2)

    @pl.when(k == 0)
    def _():
        acc_ref[...] = jnp.zeros_like(acc_ref)

    w = w_ref[...]
    acc_ref[0] += jnp.dot(x1_ref[...].astype(jnp.bfloat16), w,
                          preferred_element_type=jnp.float32)
    acc_ref[1] += jnp.dot(x2_ref[...].astype(jnp.bfloat16), w,
                          preferred_element_type=jnp.float32)

    @pl.when(k == pl.num_programs(2) - 1)
    def _():
        y_ref[...] = (acc_ref[...] + b_ref[...]).astype(y_ref.dtype)


def encoder_forward(x1_flat, x2_flat, we_bf16, be, *, tm=256, tn=256, tk=1024):
    """Both views through the encoder stand-in in one pipelined matmul call.
    Returns y_views: (2, B, feature_dim) bf16."""
    B, K = x1_flat.shape
    assert x2_flat.shape == (B, K)
    N = we_bf16.shape[1]

    tm = min(tm, B)
    tn = N if N <= 512 else min(tn, N)  # whole-N, lane-dense tiles for small N
    assert B % tm == 0 and N % tn == 0, (B, N, tm, tn)

    # Double-buffered working-set estimate with the whole K resident.
    xblk = tm * K * 4            # f32 input block per view
    wblk = K * tn * 2            # bf16 weight block
    yblk = 2 * tm * tn * 2       # bf16 output block (both views)
    fast = 2 * (2 * xblk + wblk + yblk) <= (16 << 20)

    flops = 2 * 2 * B * K * N
    bytes_accessed = 2 * B * K * 4 + K * N * 2 + N * 4 + 2 * B * N * 2
    cost = pl.CostEstimate(flops=flops, transcendentals=0,
                           bytes_accessed=bytes_accessed)
    out_shape = jax.ShapeDtypeStruct((2, B, N), jnp.bfloat16)

    if fast:
        working = 2 * (2 * xblk + wblk + yblk)
        return pl.pallas_call(
            _encoder_kernel_fused_k,
            out_shape=out_shape,
            grid_spec=pltpu.PrefetchScalarGridSpec(
                num_scalar_prefetch=0,
                grid=(B // tm, N // tn),
                in_specs=[
                    pl.BlockSpec((tm, K), lambda i, j: (i, 0)),
                    pl.BlockSpec((tm, K), lambda i, j: (i, 0)),
                    pl.BlockSpec((K, tn), lambda i, j: (0, j)),
                    pl.BlockSpec((1, tn), lambda i, j: (0, j)),
                ],
                out_specs=pl.BlockSpec((2, tm, tn), lambda i, j: (0, i, j)),
            ),
            compiler_params=pltpu.CompilerParams(
                dimension_semantics=("parallel", "parallel"),
                vmem_limit_bytes=_vmem_limit_bytes(working),
            ),
            cost_estimate=cost,
        )(x1_flat, x2_flat, we_bf16, be)

    # General path: tile K ("arbitrary", innermost), accumulate in f32 scratch.
    tk = min(tk, K)
    while K % tk != 0:
        tk //= 2
        assert tk >= 128, ("K not tileable", K)
    xblk = tm * tk * 4
    wblk = tk * tn * 2
    working = 2 * (2 * xblk + wblk + yblk) + 2 * tm * tn * 4
    return pl.pallas_call(
        _encoder_kernel_tiled_k,
        out_shape=out_shape,
        grid_spec=pltpu.PrefetchScalarGridSpec(
            num_scalar_prefetch=0,
            grid=(B // tm, N // tn, K // tk),
            in_specs=[
                pl.BlockSpec((tm, tk), lambda i, j, k: (i, k)),
                pl.BlockSpec((tm, tk), lambda i, j, k: (i, k)),
                pl.BlockSpec((tk, tn), lambda i, j, k: (k, j)),
                pl.BlockSpec((1, tn), lambda i, j, k: (0, j)),
            ],
            out_specs=pl.BlockSpec((2, tm, tn), lambda i, j, k: (0, i, j)),
            scratch_shapes=[pltpu.VMEM((2, tm, tn), jnp.float32)],
        ),
        compiler_params=pltpu.CompilerParams(
            dimension_semantics=("parallel", "parallel", "arbitrary"),
            vmem_limit_bytes=_vmem_limit_bytes(working),
        ),
        cost_estimate=cost,
    )(x1_flat, x2_flat, we_bf16, be)


# ----------------------------------------------------------------------------
# Projector (stand-in) + Predictor (exact), fused; grid over the two views so
# BatchNorm statistics stay per view.  Weights stay resident in VMEM.
# TODO(synk): for production batch sizes on v7x (B >~ 4K) add a batch-tiled
#             path with two-pass BatchNorm (per-tile sum / sum-of-squares into
#             VMEM scratch, then normalize) to stay under 64 MiB VMEM.
# ----------------------------------------------------------------------------
def _head_kernel(
    y_ref,                                   # (1, B, feature_dim)  bf16
    wp1_ref, bp1_ref, gp1_ref, bep1_ref,     # projector fc1 + bn1 (stand-in)
    wp2_ref, bp2_ref, gp2_ref, bep2_ref,     # projector fc2 + bn2 (stand-in)
    wf1_ref, bf1_ref, gf1_ref, bef1_ref,     # predictor fc1 + bn1 (exact)
    wf2_ref, bf2_ref,                        # predictor fc2       (exact)
    z_ref, p_ref,
):
    y = y_ref[0]                             # (B, feature_dim) bf16

    # --- Projector (stand-in): Linear -> BN -> ReLU -> Linear -> BN ----------
    h = jnp.dot(y, wp1_ref[...], preferred_element_type=jnp.float32) + bp1_ref[...]
    h = jnp.maximum(_bn1d_train(h, gp1_ref[...], bep1_ref[...]), 0.0)
    z = jnp.dot(h.astype(jnp.bfloat16), wp2_ref[...],
                preferred_element_type=jnp.float32) + bp2_ref[...]
    z = _bn1d_train(z, gp2_ref[...], bep2_ref[...])
    z_ref[0] = z.astype(z_ref.dtype)

    # --- Predictor (exact): fc1 -> BatchNorm1d -> ReLU -> fc2 ----------------
    q = jnp.dot(z.astype(jnp.bfloat16), wf1_ref[...],
                preferred_element_type=jnp.float32) + bf1_ref[...]
    q = jnp.maximum(_bn1d_train(q, gf1_ref[...], bef1_ref[...]), 0.0)
    p = jnp.dot(q.astype(jnp.bfloat16), wf2_ref[...],
                preferred_element_type=jnp.float32) + bf2_ref[...]
    p_ref[0] = p.astype(p_ref.dtype)


def head_forward(y_views, params):
    """y_views: (2, B, feature_dim) bf16  ->  (z, p), each (2, B, latent_dim) f32."""
    V, B, F = y_views.shape
    L = params["wp2"].shape[1]

    weights = (
        params["wp1"].astype(jnp.bfloat16), params["bp1"],
        params["gp1"], params["bep1"],
        params["wp2"].astype(jnp.bfloat16), params["bp2"],
        params["gp2"], params["bep2"],
        params["wf1"].astype(jnp.bfloat16), params["bf1"],
        params["gf1"], params["bef1"],
        params["wf2"].astype(jnp.bfloat16), params["bf2"],
    )

    def resident(arr):
        # Same block index on every grid step -> weight stays resident in VMEM.
        return pl.BlockSpec(arr.shape, lambda v: (0, 0))

    in_specs = [pl.BlockSpec((1, B, F), lambda v: (v, 0, 0))]
    in_specs += [resident(w) for w in weights]
    out_spec = pl.BlockSpec((1, B, L), lambda v: (v, 0, 0))

    w_bytes = sum(int(w.size) * jnp.dtype(w.dtype).itemsize for w in weights)
    io_bytes = 2 * (B * F * 2) + 2 * (2 * B * L * 4)     # double-buffered in/out
    inter_bytes = 8 * B * max(F, L) * 4                  # f32 intermediates
    working = w_bytes + io_bytes + inter_bytes

    z, p = pl.pallas_call(
        _head_kernel,
        out_shape=(
            jax.ShapeDtypeStruct((V, B, L), jnp.float32),
            jax.ShapeDtypeStruct((V, B, L), jnp.float32),
        ),
        grid_spec=pltpu.PrefetchScalarGridSpec(
            num_scalar_prefetch=0,
            grid=(V,),
            in_specs=in_specs,
            out_specs=(out_spec, out_spec),
        ),
        compiler_params=pltpu.CompilerParams(
            dimension_semantics=("parallel",),   # views are independent
            vmem_limit_bytes=_vmem_limit_bytes(working),
        ),
    )(y_views, *weights)
    return z, p


# ----------------------------------------------------------------------------
# SimSiam.forward
# ----------------------------------------------------------------------------
def simsiam_forward(x1, x2, params):
    """SimSiam.forward: returns (p1, p2, z1, z2).  x1/x2 are NCHW f32."""
    B = x1.shape[0]
    # Free reshapes only -- no wrapper-side cast/concat HBM pass; the encoder
    # kernel reads f32 tiles and casts to bf16 on the VPU.
    x1f = x1.reshape(B, -1)
    x2f = x2.reshape(B, -1)

    y_views = encoder_forward(x1f, x2f, params["we"].astype(jnp.bfloat16),
                              params["be"])                  # (2, B, F) bf16

    # Projector + Predictor fused; per-view grid keeps BN stats per view.
    z, p = head_forward(y_views, params)
    return p[0], p[1], z[0], z[1]


def init_params(key, in_dim, feature_dim, latent_dim):
    """Deterministic parameter init.  Linear weights are created PyTorch-style
    (out, in) and transposed to (in, out) for the kernels."""
    hidden = latent_dim // 4
    keys = jax.random.split(key, 16)

    def lin(k, out_f, in_f):
        w = jax.random.normal(k, (out_f, in_f), jnp.float32) * 0.02
        return w.T  # (in, out) for x @ W

    def bias(k, n):
        return jax.random.normal(k, (1, n), jnp.float32) * 0.01

    return {
        # encoder stand-in
        "we": lin(keys[0], feature_dim, in_dim),
        "be": bias(keys[1], feature_dim),
        # projector stand-in
        "wp1": lin(keys[2], latent_dim, feature_dim),
        "bp1": bias(keys[3], latent_dim),
        "gp1": jnp.ones((1, latent_dim), jnp.float32),
        "bep1": jnp.zeros((1, latent_dim), jnp.float32),
        "wp2": lin(keys[4], latent_dim, latent_dim),
        "bp2": bias(keys[5], latent_dim),
        "gp2": jnp.ones((1, latent_dim), jnp.float32),
        "bep2": jnp.zeros((1, latent_dim), jnp.float32),
        # predictor (exact shapes from the PyTorch module)
        "wf1": lin(keys[6], hidden, latent_dim),      # fc1: latent -> latent//4
        "bf1": bias(keys[7], hidden),
        "gf1": jnp.ones((1, hidden), jnp.float32),    # bn1 weight
        "bef1": jnp.zeros((1, hidden), jnp.float32),  # bn1 bias
        "wf2": lin(keys[8], latent_dim, hidden),      # fc2: latent//4 -> latent
        "bf2": bias(keys[9], latent_dim),
    }


def _reference(x1, x2, params):
    """Pure-JAX reference (same bf16-operand / f32-accumulate matmul recipe)."""
    def dotb(a, b):
        return jnp.dot(a.astype(jnp.bfloat16), b.astype(jnp.bfloat16),
                       preferred_element_type=jnp.float32)

    def branch(x):
        B = x.shape[0]
        xf = x.reshape(B, -1)
        y = dotb(xf, params["we"]) + params["be"]
        h = dotb(y, params["wp1"]) + params["bp1"]
        h = jnp.maximum(_bn1d_train(h, params["gp1"], params["bep1"]), 0.0)
        z = dotb(h, params["wp2"]) + params["bp2"]
        z = _bn1d_train(z, params["gp2"], params["bep2"])
        q = dotb(z, params["wf1"]) + params["bf1"]
        q = jnp.maximum(_bn1d_train(q, params["gf1"], params["bef1"]), 0.0)
        p = dotb(q, params["wf2"]) + params["bf2"]
        return z, p

    z1, p1 = branch(x1)
    z2, p2 = branch(x2)
    return p1, p2, z1, z2


if __name__ == "__main__":
    # Small but lane-dense shapes: every feature dimension is a multiple of 128
    # (feature_dim=256, latent_dim=512 -> predictor hidden = 128).
    B, C, H, W = 8, 4, 16, 16
    feature_dim, latent_dim = 256, 512
    in_dim = C * H * W                      # 1024

    key = jax.random.PRNGKey(0)
    kx1, kx2, kp = jax.random.split(key, 3)
    x1 = jax.random.normal(kx1, (B, C, H, W), jnp.float32)
    x2 = jax.random.normal(kx2, (B, C, H, W), jnp.float32)
    params = init_params(kp, in_dim, feature_dim, latent_dim)

    p1, p2, z1, z2 = jax.block_until_ready(simsiam_forward(x1, x2, params))

    # Correctness check against pure-JAX reference.
    rp1, rp2, rz1, rz2 = _reference(x1, x2, params)
    for a, b in ((p1, rp1), (p2, rp2), (z1, rz1), (z2, rz2)):
        assert a.shape == b.shape
        err = float(jnp.max(jnp.abs(a - b)))
        assert err < 5e-3, err

    print("KERNEL_OK")
</pallas_src>

<mosaic_0001>
module attributes {stable_mosaic.version = 11 : i64} {
  func.func @_encoder_kernel_fused_k(%arg0: i32, %arg1: i32, %arg2: memref<8x1024xf32, #tpu.memory_space<vmem>>, %arg3: memref<8x1024xf32, #tpu.memory_space<vmem>>, %arg4: memref<1024x256xbf16, #tpu.memory_space<vmem>>, %arg5: memref<1x256xf32, #tpu.memory_space<vmem>>, %arg6: memref<2x8x256xbf16, #tpu.memory_space<vmem>>) attributes {dimension_semantics = [#tpu.dimension_semantics<parallel>, #tpu.dimension_semantics<parallel>], iteration_bounds = array<i64: 1, 1>, scalar_prefetch = 0 : i64, scratch_operands = 0 : i64, tpu.core_type = #tpu.core_type<tc>, window_params = [{transform_indices = @transform_0, window_bounds = array<i64: 8, 1024>}, {transform_indices = @transform_1, window_bounds = array<i64: 8, 1024>}, {transform_indices = @transform_2, window_bounds = array<i64: 1024, 256>}, {transform_indices = @transform_3, window_bounds = array<i64: 1, 256>}, {transform_indices = @transform_4, window_bounds = array<i64: 2, 8, 256>}]} {
    %c0 = arith.constant 0 : index
    %c0_0 = arith.constant 0 : index
    %0 = vector.load %arg4[%c0, %c0_0] : memref<1024x256xbf16, #tpu.memory_space<vmem>>, vector<1024x256xbf16>
    %c0_1 = arith.constant 0 : index
    %c0_2 = arith.constant 0 : index
    %1 = vector.load %arg5[%c0_1, %c0_2] : memref<1x256xf32, #tpu.memory_space<vmem>>, vector<1x256xf32>
    %c0_3 = arith.constant 0 : index
    %c0_4 = arith.constant 0 : index
    %2 = vector.load %arg2[%c0_3, %c0_4] : memref<8x1024xf32, #tpu.memory_space<vmem>>, vector<8x1024xf32>
    %3 = arith.truncf %2 : vector<8x1024xf32> to vector<8x1024xbf16>
    %cst = arith.constant dense<0.000000e+00> : vector<8x256xf32>
    %4 = tpu.matmul %3, %0, %cst {dimension_numbers = #tpu.dot_dimension_numbers<[1], [0], [0], [1], [0, 0, 1, 1], [], []>} : vector<8x1024xbf16>, vector<1024x256xbf16>, vector<8x256xf32> -> vector<8x256xf32>
    %c0_5 = arith.constant 0 : index
    %c0_6 = arith.constant 0 : index
    %5 = vector.load %arg3[%c0_5, %c0_6] : memref<8x1024xf32, #tpu.memory_space<vmem>>, vector<8x1024xf32>
    %6 = arith.truncf %5 : vector<8x1024xf32> to vector<8x1024xbf16>
    %cst_7 = arith.constant dense<0.000000e+00> : vector<8x256xf32>
    %7 = tpu.matmul %6, %0, %cst_7 {dimension_numbers = #tpu.dot_dimension_numbers<[1], [0], [0], [1], [0, 0, 1, 1], [], []>} : vector<8x1024xbf16>, vector<1024x256xbf16>, vector<8x256xf32> -> vector<8x256xf32>
    %8 = vector.broadcast %1 : vector<1x256xf32> to vector<8x256xf32>
    %9 = arith.addf %4, %8 : vector<8x256xf32>
    %10 = arith.truncf %9 : vector<8x256xf32> to vector<8x256xbf16>
    %c0_8 = arith.constant 0 : index
    %c0_9 = arith.constant 0 : index
    %c0_10 = arith.constant 0 : index
    %11 = vector.load %arg6[%c0_8, %c0_9, %c0_10] : memref<2x8x256xbf16, #tpu.memory_space<vmem>>, vector<1x8x256xbf16>
    %12 = vector.shape_cast %11 : vector<1x8x256xbf16> to vector<8x256xbf16>
    %13 = vector.shape_cast %10 : vector<8x256xbf16> to vector<1x8x256xbf16>
    tpu.vector_store %arg6[%c0_8, %c0_9, %c0_10], %13 {strides = array<i32>} : memref<2x8x256xbf16, #tpu.memory_space<vmem>>, vector<1x8x256xbf16>,
    %14 = vector.broadcast %1 : vector<1x256xf32> to vector<8x256xf32>
    %15 = arith.addf %7, %14 : vector<8x256xf32>
    %16 = arith.truncf %15 : vector<8x256xf32> to vector<8x256xbf16>
    %c1 = arith.constant 1 : index
    %c0_11 = arith.constant 0 : index
    %c0_12 = arith.constant 0 : index
    %17 = vector.load %arg6[%c1, %c0_11, %c0_12] : memref<2x8x256xbf16, #tpu.memory_space<vmem>>, vector<1x8x256xbf16>
    %18 = vector.shape_cast %17 : vector<1x8x256xbf16> to vector<8x256xbf16>
    %19 = vector.shape_cast %16 : vector<8x256xbf16> to vector<1x8x256xbf16>
    tpu.vector_store %arg6[%c1, %c0_11, %c0_12], %19 {strides = array<i32>} : memref<2x8x256xbf16, #tpu.memory_space<vmem>>, vector<1x8x256xbf16>,
    return
  }
  func.func @transform_0(%arg0: i32, %arg1: i32) -> (i32, i32) {
    %c0_i32 = arith.constant 0 : i32
    %c0_i32_0 = arith.constant 0 : i32
    return %arg0, %c0_i32 : i32, i32
  }
  func.func @transform_1(%arg0: i32, %arg1: i32) -> (i32, i32) {
    %c0_i32 = arith.constant 0 : i32
    %c0_i32_0 = arith.constant 0 : i32
    return %arg0, %c0_i32 : i32, i32
  }
  func.func @transform_2(%arg0: i32, %arg1: i32) -> (i32, i32) {
    %c0_i32 = arith.constant 0 : i32
    %c0_i32_0 = arith.constant 0 : i32
    return %c0_i32, %arg1 : i32, i32
  }
  func.func @transform_3(%arg0: i32, %arg1: i32) -> (i32, i32) {
    %c0_i32 = arith.constant 0 : i32
    %c0_i32_0 = arith.constant 0 : i32
    return %c0_i32, %arg1 : i32, i32
  }
  func.func @transform_4(%arg0: i32, %arg1: i32) -> (i32, i32, i32) {
    %c0_i32 = arith.constant 0 : i32
    %c0_i32_0 = arith.constant 0 : i32
    return %c0_i32, %arg0, %arg1 : i32, i32, i32
  }
}

</mosaic_0001>

<llo_original>
// kernel: tpu_custom_call.1
$region0: #{tpu_custom_call.1}
  #allocation0 [shape = 'u32[]', space=smem, size = 0x4, offset = 0x4, fixed_abs, tag = 'smem constant byte address 0x4 - core index']
  #allocation1 [shape = 'u32[144,128]{1,0:T(1,128)}', space=vmem, size = 0x12000, scoped, tag = 'internal scratch']
  %s0 = inlined_call_operand.hbm [shape: f32[8,1024], index: 0, kind: input, shape index: {}]
  %s1 = inlined_call_operand.hbm [shape: f32[8,1024], index: 1, kind: input, shape index: {}]
  %s2 = inlined_call_operand.hbm [shape: bf16[1024,256], index: 2, kind: input, shape index: {}]
  %s3 = inlined_call_operand.vmem [shape: f32[1,256], index: 3, kind: input, shape index: {}]
  %s4 = inlined_call_operand.hbm [shape: bf16[2,8,256], index: 4, kind: output, shape index: {}]
  %s5 = sld [smem:[#allocation0]]
  $region38: #{tpu_custom_call.1} parent=0
    _
  %s7 = ssub.s32 1, %s5
  %s8 = scalar_select 0, %s7, %s5
  $region1: #{tpu_custom_call.1} parent=0
    #allocation2 [shape = 'u8[32768]{0}', space=vmem, size = 0x8000, scoped, tag = 'input window, operand 0, single buffered']
    #allocation3 [shape = 's32[1]{0}', space=sflag, size = 0x4, scoped, tag = 'scoped memory for tpu_custom_call.1']
    #allocation4 [shape = 's32[1]{0}', space=sflag, size = 0x4, scoped, tag = 'scoped memory for tpu_custom_call.1']
    #allocation5 [shape = 'u8[32768]{0}', space=vmem, size = 0x8000, scoped, tag = 'input window, operand 1, single buffered']
    #allocation6 [shape = 's32[1]{0}', space=sflag, size = 0x4, scoped, tag = 'scoped memory for tpu_custom_call.1']
    #allocation7 [shape = 'u8[524288]{0}', space=vmem, size = 0x80000, scoped, tag = 'input window, operand 2, single buffered']
    #allocation8 [shape = 'u8[8192]{0}', space=vmem, size = 0x2000, scoped, tag = 'output window, operand 0, single buffered']
    %9 = vsyncpa [#allocation3], 0
    %10 = vsyncpa [#allocation6], 0
    %11 = vsyncpa [#allocation4], 0
    // Predicated region
    $region2: #{tpu_custom_call.1} parent=1 // pred_check
      _
    $region3: #{tpu_custom_call.1} parent=1 // pred_check_branch
      %13 = sbr.rel (0) target = $region5
    $region4: #{tpu_custom_call.1} parent=1 // pred_region
      %s15 = ssub.s32 1024, 1024
      %16 = vsyncadd [#allocation3], %s15
      %s18 = sshll.u32 [#allocation2], 4
      %s19 = int_to_ptr.vmem [resolvable:$true] %s18
      %21 = dma.hbm_to_vmem [thread:$0]  %s0, 1024, %s19, [#allocation3]
    $region5: #{tpu_custom_call.1} parent=1 // pred_fallthru
      _
    // Predicated region
    $region6: #{tpu_custom_call.1} parent=1 // pred_check
      _
    $region7: #{tpu_custom_call.1} parent=1 // pred_check_branch
      %23 = sbr.rel (0) target = $region9
    $region8: #{tpu_custom_call.1} parent=1 // pred_region
      %s25 = ssub.s32 1024, 1024
      %26 = vsyncadd [#allocation6], %s25
      %s28 = sshll.u32 [#allocation5], 4
      %s29 = int_to_ptr.vmem [resolvable:$true] %s28
      %31 = dma.hbm_to_vmem [thread:$0]  %s1, 1024, %s29, [#allocation6]
    $region9: #{tpu_custom_call.1} parent=1 // pred_fallthru
      _
    // Predicated region
    $region10: #{tpu_custom_call.1} parent=1 // pred_check
      _
    $region11: #{tpu_custom_call.1} parent=1 // pred_check_branch
      %33 = sbr.rel (0) target = $region13
    $region12: #{tpu_custom_call.1} parent=1 // pred_region
      %s35 = ssub.s32 16384, 16384
      %36 = vsyncadd [#allocation6], %s35
      %s37 = sshll.u32 [#allocation7], 4
      %s38 = int_to_ptr.vmem [resolvable:$true] %s37
      %43 = dma.hbm_to_vmem [thread:$0]  %s2, 16384, %s38, [#allocation6], 128, 128, 8
    $region13: #{tpu_custom_call.1} parent=1 // pred_fallthru
      _
    // Predicated region
    $region14: #{tpu_custom_call.1} parent=1 // pred_check
      _
    $region15: #{tpu_custom_call.1} parent=1 // pred_check_branch
      %45 = sbr.rel (0) target = $region17
    $region16: #{tpu_custom_call.1} parent=1 // pred_region
      _
    $region17: #{tpu_custom_call.1} parent=1 // pred_fallthru
      _
    // Predicated region
    $region18: #{tpu_custom_call.1} parent=1 // pred_check
      _
    $region19: #{tpu_custom_call.1} parent=1 // pred_check_branch
      %47 = sbr.rel (0) target = $region21
    $region20: #{tpu_custom_call.1} parent=1 // pred_region
      %48 = dma.done [#allocation3], 1024
    $region21: #{tpu_custom_call.1} parent=1 // pred_fallthru
      _
    // Predicated region
    $region22: #{tpu_custom_call.1} parent=1 // pred_check
      _
    $region23: #{tpu_custom_call.1} parent=1 // pred_check_branch
      %50 = sbr.rel (0) target = $region25
    $region24: #{tpu_custom_call.1} parent=1 // pred_region
      %51 = dma.done [#allocation6], 1024
    $region25: #{tpu_custom_call.1} parent=1 // pred_fallthru
      _
    // Predicated region
    $region26: #{tpu_custom_call.1} parent=1 // pred_check
      _
    $region27: #{tpu_custom_call.1} parent=1 // pred_check_branch
      %53 = sbr.rel (0) target = $region29
    $region28: #{tpu_custom_call.1} parent=1 // pred_region
      %54 = dma.done [#allocation6], 16384
    $region29: #{tpu_custom_call.1} parent=1 // pred_fallthru
      _
    %v55 = vld [vmem:[#allocation7] sm:$0xff]
    %v56 = vld [vmem:[#allocation7 + $0x8] sm:$0xff]
    %v57 = vld [vmem:[#allocation7 + $0x10] sm:$0xff]
    %v58 = vld [vmem:[#allocation7 + $0x18] sm:$0xff]
    %v59 = vld [vmem:[#allocation7 + $0x20] sm:$0xff]
    %v60 = vld [vmem:[#allocation7 + $0x28] sm:$0xff]
    %v61 = vld [vmem:[#allocation7 + $0x30] sm:$0xff]
    %v62 = vld [vmem:[#allocation7 + $0x38] sm:$0xff]
    %v63 = vld [vmem:[#allocation7 + $0x40] sm:$0xff]
    %v64 = vld [vmem:[#allocation7 + $0x48] sm:$0xff]
    %v65 = vld [vmem:[#allocation7 + $0x50] sm:$0xff]
    %v66 = vld [vmem:[#allocation7 + $0x58] sm:$0xff]
    %v67 = vld [vmem:[#allocation7 + $0x60] sm:$0xff]
    %v68 = vld [vmem:[#allocation7 + $0x68] sm:$0xff]
    %v69 = vld [vmem:[#allocation7 + $0x70] sm:$0xff]
    %v70 = vld [vmem:[#allocation7 + $0x78] sm:$0xff]
    %v71 = vld [vmem:[#allocation7 + $0x80] sm:$0xff]
    %v72 = vld [vmem:[#allocation7 + $0x88] sm:$0xff]
    %v73 = vld [vmem:[#allocation7 + $0x90] sm:$0xff]
    %v74 = vld [vmem:[#allocation7 + $0x98] sm:$0xff]
    %v75 = vld [vmem:[#allocation7 + $0xa0] sm:$0xff]
    %v76 = vld [vmem:[#allocation7 + $0xa8] sm:$0xff]
    %v77 = vld [vmem:[#allocation7 + $0xb0] sm:$0xff]
    %v78 = vld [vmem:[#allocation7 + $0xb8] sm:$0xff]
    %v79 = vld [vmem:[#allocation7 + $0xc0] sm:$0xff]
    %v80 = vld [vmem:[#allocation7 + $0xc8] sm:$0xff]
    %v81 = vld [vmem:[#allocation7 + $0xd0] sm:$0xff]
    %v82 = vld [vmem:[#allocation7 + $0xd8] sm:$0xff]
    %v83 = vld [vmem:[#allocation7 + $0xe0] sm:$0xff]
    %v84 = vld [vmem:[#allocation7 + $0xe8] sm:$0xff]
    %v85 = vld [vmem:[#allocation7 + $0xf0] sm:$0xff]
    %v86 = vld [vmem:[#allocation7 + $0xf8] sm:$0xff]
    %v87 = vld [vmem:[#allocation7 + $0x100] sm:$0xff]
    %v88 = vld [vmem:[#allocation7 + $0x108] sm:$0xff]
    %v89 = vld [vmem:[#allocation7 + $0x110] sm:$0xff]
    %v90 = vld [vmem:[#allocation7 + $0x118] sm:$0xff]
    %v91 = vld [vmem:[#allocation7 + $0x120] sm:$0xff]
    %v92 = vld [vmem:[#allocation7 + $0x128] sm:$0xff]
    %v93 = vld [vmem:[#allocation7 + $0x130] sm:$0xff]
    %v94 = vld [vmem:[#allocation7 + $0x138] sm:$0xff]
    %v95 = vld [vmem:[#allocation7 + $0x140] sm:$0xff]
    %v96 = vld [vmem:[#allocation7 + $0x148] sm:$0xff]
    %v97 = vld [vmem:[#allocation7 + $0x150] sm:$0xff]
    %v98 = vld [vmem:[#allocation7 + $0x158] sm:$0xff]
    %v99 = vld [vmem:[#allocation7 + $0x160] sm:$0xff]
    %v100 = vld [vmem:[#allocation7 + $0x168] sm:$0xff]
    %v101 = vld [vmem:[#allocation7 + $0x170] sm:$0xff]
    %v102 = vld [vmem:[#allocation7 + $0x178] sm:$0xff]
    %v103 = vld [vmem:[#allocation7 + $0x180] sm:$0xff]
    %v104 = vld [vmem:[#allocation7 + $0x188] sm:$0xff]
    %v105 = vld [vmem:[#allocation7 + $0x190] sm:$0xff]
    %v106 = vld [vmem:[#allocation7 + $0x198] sm:$0xff]
    %v107 = vld [vmem:[#allocation7 + $0x1a0] sm:$0xff]
    %v108 = vld [vmem:[#allocation7 + $0x1a8] sm:$0xff]
    %v109 = vld [vmem:[#allocation7 + $0x1b0] sm:$0xff]
    %v110 = vld [vmem:[#allocation7 + $0x1b8] sm:$0xff]
    %v111 = vld [vmem:[#allocation7 + $0x1c0] sm:$0xff]
    %v112 = vld [vmem:[#allocation7 + $0x1c8] sm:$0xff]
    %v113 = vld [vmem:[#allocation7 + $0x1d0] sm:$0xff]
    %v114 = vld [vmem:[#allocation7 + $0x1d8] sm:$0xff]
    %v115 = vld [vmem:[#allocation7 + $0x1e0] sm:$0xff]
    %v116 = vld [vmem:[#allocation7 + $0x1e8] sm:$0xff]
    %v117 = vld [vmem:[#allocation7 + $0x1f0] sm:$0xff]
    %v118 = vld [vmem:[#allocation7 + $0x1f8] sm:$0xff]
    %v119 = vld [vmem:[#allocation7 + $0x200] sm:$0xff]
    %v120 = vld [vmem:[#allocation7 + $0x208] sm:$0xff]
    %v121 = vld [vmem:[#allocation7 + $0x210] sm:$0xff]
    %v122 = vld [vmem:[#allocation7 + $0x218] sm:$0xff]
    %v123 = vld [vmem:[#allocation7 + $0x220] sm:$0xff]
    %v124 = vld [vmem:[#allocation7 + $0x228] sm:$0xff]
    %v125 = vld [vmem:[#allocation7 + $0x230] sm:$0xff]
    %v126 = vld [vmem:[#allocation7 + $0x238] sm:$0xff]
    %v127 = vld [vmem:[#allocation7 + $0x240] sm:$0xff]
    %v128 = vld [vmem:[#allocation7 + $0x248] sm:$0xff]
    %v129 = vld [vmem:[#allocation7 + $0x250] sm:$0xff]
    %v130 = vld [vmem:[#allocation7 + $0x258] sm:$0xff]
    %v131 = vld [vmem:[#allocation7 + $0x260] sm:$0xff]
    %v132 = vld [vmem:[#allocation7 + $0x268] sm:$0xff]
    %v133 = vld [vmem:[#allocation7 + $0x270] sm:$0xff]
    %v134 = vld [vmem:[#allocation7 + $0x278] sm:$0xff]
    %v135 = vld [vmem:[#allocation7 + $0x280] sm:$0xff]
    %v136 = vld [vmem:[#allocation7 + $0x288] sm:$0xff]
    %v137 = vld [vmem:[#allocation7 + $0x290] sm:$0xff]
    %v138 = vld [vmem:[#allocation7 + $0x298] sm:$0xff]
    %v139 = vld [vmem:[#allocation7 + $0x2a0] sm:$0xff]
    %v140 = vld [vmem:[#allocation7 + $0x2a8] sm:$0xff]
    %v141 = vld [vmem:[#allocation7 + $0x2b0] sm:$0xff]
    %v142 = vld [vmem:[#allocation7 + $0x2b8] sm:$0xff]
    %v143 = vld [vmem:[#allocation7 + $0x2c0] sm:$0xff]
    %v144 = vld [vmem:[#allocation7 + $0x2c8] sm:$0xff]
    %v145 = vld [vmem:[#allocation7 + $0x2d0] sm:$0xff]
    %v146 = vld [vmem:[#allocation7 + $0x2d8] sm:$0xff]
    %v147 = vld [vmem:[#allocation7 + $0x2e0] sm:$0xff]
    %v148 = vld [vmem:[#allocation7 + $0x2e8] sm:$0xff]
    %v149 = vld [vmem:[#allocation7 + $0x2f0] sm:$0xff]
    %v150 = vld [vmem:[#allocation7 + $0x2f8] sm:$0xff]
    %v151 = vld [vmem:[#allocation7 + $0x300] sm:$0xff]
    %v152 = vld [vmem:[#allocation7 + $0x308] sm:$0xff]
    %v153 = vld [vmem:[#allocation7 + $0x310] sm:$0xff]
    %v154 = vld [vmem:[#allocation7 + $0x318] sm:$0xff]
    %v155 = vld [vmem:[#allocation7 + $0x320] sm:$0xff]
    %v156 = vld [vmem:[#allocation7 + $0x328] sm:$0xff]
    %v157 = vld [vmem:[#allocation7 + $0x330] sm:$0xff]
    %v158 = vld [vmem:[#allocation7 + $0x338] sm:$0xff]
    %v159 = vld [vmem:[#allocation7 + $0x340] sm:$0xff]
    %v160 = vld [vmem:[#allocation7 + $0x348] sm:$0xff]
    %v161 = vld [vmem:[#allocation7 + $0x350] sm:$0xff]
    %v162 = vld [vmem:[#allocation7 + $0x358] sm:$0xff]
    %v163 = vld [vmem:[#allocation7 + $0x360] sm:$0xff]
    %v164 = vld [vmem:[#allocation7 + $0x368] sm:$0xff]
    %v165 = vld [vmem:[#allocation7 + $0x370] sm:$0xff]
    %v166 = vld [vmem:[#allocation7 + $0x378] sm:$0xff]
    %v167 = vld [vmem:[#allocation7 + $0x380] sm:$0xff]
    %v168 = vld [vmem:[#allocation7 + $0x388] sm:$0xff]
    %v169 = vld [vmem:[#allocation7 + $0x390] sm:$0xff]
    %v170 = vld [vmem:[#allocation7 + $0x398] sm:$0xff]
    %v171 = vld [vmem:[#allocation7 + $0x3a0] sm:$0xff]
    %v172 = vld [vmem:[#allocation7 + $0x3a8] sm:$0xff]
    %v173 = vld [vmem:[#allocation7 + $0x3b0] sm:$0xff]
    %v174 = vld [vmem:[#allocation7 + $0x3b8] sm:$0xff]
    %v175 = vld [vmem:[#allocation7 + $0x3c0] sm:$0xff]
    %v176 = vld [vmem:[#allocation7 + $0x3c8] sm:$0xff]
    %v177 = vld [vmem:[#allocation7 + $0x3d0] sm:$0xff]
    %v178 = vld [vmem:[#allocation7 + $0x3d8] sm:$0xff]
    %v179 = vld [vmem:[#allocation7 + $0x3e0] sm:$0xff]
    %v180 = vld [vmem:[#allocation7 + $0x3e8] sm:$0xff]
    %v181 = vld [vmem:[#allocation7 + $0x3f0] sm:$0xff]
    %v182 = vld [vmem:[#allocation7 + $0x3f8] sm:$0xff]
    %v183 = vld [vmem:[%s3] sm:$0x3]
    %v184 = vld [vmem:[#allocation2] sm:$0xff]
    %v185 = vld [vmem:[#allocation2 + $0x8] sm:$0xff]
    %v186 = vld [vmem:[#allocation2 + $0x10] sm:$0xff]
    %v187 = vld [vmem:[#allocation2 + $0x18] sm:$0xff]
    %v188 = vld [vmem:[#allocation2 + $0x20] sm:$0xff]
    %v189 = vld [vmem:[#allocation2 + $0x28] sm:$0xff]
    %v190 = vld [vmem:[#allocation2 + $0x30] sm:$0xff]
    %v191 = vld [vmem:[#allocation2 + $0x38] sm:$0xff]
    %v192 = vpack.c.bf16 %v184, %v184
    %v193 = vpack.c.bf16 %v185, %v185
    %v194 = vpack.c.bf16 %v186, %v186
    %v195 = vpack.c.bf16 %v187, %v187
    %v196 = vpack.c.bf16 %v188, %v188
    %v197 = vpack.c.bf16 %v189, %v189
    %v198 = vpack.c.bf16 %v190, %v190
    %v199 = vpack.c.bf16 %v191, %v191
    %v200 = vld [vmem:[#allocation5] sm:$0xff]
    %v201 = vld [vmem:[#allocation5 + $0x8] sm:$0xff]
    %v202 = vld [vmem:[#allocation5 + $0x10] sm:$0xff]
    %v203 = vld [vmem:[#allocation5 + $0x18] sm:$0xff]
    %v204 = vld [vmem:[#allocation5 + $0x20] sm:$0xff]
    %v205 = vld [vmem:[#allocation5 + $0x28] sm:$0xff]
    %v206 = vld [vmem:[#allocation5 + $0x30] sm:$0xff]
    %v207 = vld [vmem:[#allocation5 + $0x38] sm:$0xff]
    %v208 = vpack.c.bf16 %v200, %v200
    %v209 = vpack.c.bf16 %v201, %v201
    %v210 = vpack.c.bf16 %v202, %v202
    %v211 = vpack.c.bf16 %v203, %v203
    %v212 = vpack.c.bf16 %v204, %v204
    %v213 = vpack.c.bf16 %v205, %v205
    %v214 = vpack.c.bf16 %v206, %v206
    %v215 = vpack.c.bf16 %v207, %v207
    %v217 = vlaneseq
    %v218 = vshrl.u32 %v217, 7
    %v219 = vsub.s32 0, %v218
    %v220 = vrot.slane %v183, %v219
    %v221 = vlaneseq
    %v222 = vshrl.u32 %v221, 7
    %v223 = vsub.s32 1, %v222
    %v224 = vrot.slane %v183, %v223
    %v355 = vunpack.c.l.b16 %v55
    %v356 = vunpack.c.h.b16 %v55
    %v357 = vunpack.c.l.b16 %v56
    %v358 = vunpack.c.h.b16 %v56
    %v359 = vunpack.c.l.b16 %v57
    %v360 = vunpack.c.h.b16 %v57
    %v361 = vunpack.c.l.b16 %v58
    %v362 = vunpack.c.h.b16 %v58
    %v363 = vunpack.c.l.b16 %v59
    %v364 = vunpack.c.h.b16 %v59
    %v365 = vunpack.c.l.b16 %v60
    %v366 = vunpack.c.h.b16 %v60
    %v367 = vunpack.c.l.b16 %v61
    %v368 = vunpack.c.h.b16 %v61
    %v369 = vunpack.c.l.b16 %v62
    %v370 = vunpack.c.h.b16 %v62
    %v371 = vunpack.c.l.b16 %v63
    %v372 = vunpack.c.h.b16 %v63
    %v373 = vunpack.c.l.b16 %v64
    %v374 = vunpack.c.h.b16 %v64
    %v375 = vunpack.c.l.b16 %v65
    %v376 = vunpack.c.h.b16 %v65
    %v377 = vunpack.c.l.b16 %v66
    %v378 = vunpack.c.h.b16 %v66
    %v379 = vunpack.c.l.b16 %v67
    %v380 = vunpack.c.h.b16 %v67
    %v381 = vunpack.c.l.b16 %v68
    %v382 = vunpack.c.h.b16 %v68
    %v383 = vunpack.c.l.b16 %v69
    %v384 = vunpack.c.h.b16 %v69
    %v385 = vunpack.c.l.b16 %v70
    %v386 = vunpack.c.h.b16 %v70
    %v387 = vunpack.c.l.b16 %v71
    %v388 = vunpack.c.h.b16 %v71
    %v389 = vunpack.c.l.b16 %v72
    %v390 = vunpack.c.h.b16 %v72
    %v391 = vunpack.c.l.b16 %v73
    %v392 = vunpack.c.h.b16 %v73
    %v393 = vunpack.c.l.b16 %v74
    %v394 = vunpack.c.h.b16 %v74
    %v395 = vunpack.c.l.b16 %v75
    %v396 = vunpack.c.h.b16 %v75
    %v397 = vunpack.c.l.b16 %v76
    %v398 = vunpack.c.h.b16 %v76
    %v399 = vunpack.c.l.b16 %v77
    %v400 = vunpack.c.h.b16 %v77
    %v401 = vunpack.c.l.b16 %v78
    %v402 = vunpack.c.h.b16 %v78
    %v403 = vunpack.c.l.b16 %v79
    %v404 = vunpack.c.h.b16 %v79
    %v405 = vunpack.c.l.b16 %v80
    %v406 = vunpack.c.h.b16 %v80
    %v407 = vunpack.c.l.b16 %v81
    %v408 = vunpack.c.h.b16 %v81
    %v409 = vunpack.c.l.b16 %v82
    %v410 = vunpack.c.h.b16 %v82
    %v411 = vunpack.c.l.b16 %v83
    %v412 = vunpack.c.h.b16 %v83
    %v413 = vunpack.c.l.b16 %v84
    %v414 = vunpack.c.h.b16 %v84
    %v415 = vunpack.c.l.b16 %v85
    %v416 = vunpack.c.h.b16 %v85
    %v417 = vunpack.c.l.b16 %v86
    %v418 = vunpack.c.h.b16 %v86
    %v419 = vunpack.c.l.b16 %v87
    %v420 = vunpack.c.h.b16 %v87
    %v421 = vunpack.c.l.b16 %v88
    %v422 = vunpack.c.h.b16 %v88
    %v423 = vunpack.c.l.b16 %v89
    %v424 = vunpack.c.h.b16 %v89
    %v425 = vunpack.c.l.b16 %v90
    %v426 = vunpack.c.h.b16 %v90
    %v427 = vunpack.c.l.b16 %v91
    %v428 = vunpack.c.h.b16 %v91
    %v429 = vunpack.c.l.b16 %v92
    %v430 = vunpack.c.h.b16 %v92
    %v431 = vunpack.c.l.b16 %v93
    %v432 = vunpack.c.h.b16 %v93
    %v433 = vunpack.c.l.b16 %v94
    %v434 = vunpack.c.h.b16 %v94
    %v435 = vunpack.c.l.b16 %v95
    %v436 = vunpack.c.h.b16 %v95
    %v437 = vunpack.c.l.b16 %v96
    %v438 = vunpack.c.h.b16 %v96
    %v439 = vunpack.c.l.b16 %v97
    %v440 = vunpack.c.h.b16 %v97
    %v441 = vunpack.c.l.b16 %v98
    %v442 = vunpack.c.h.b16 %v98
    %v443 = vunpack.c.l.b16 %v99
    %v444 = vunpack.c.h.b16 %v99
    %v445 = vunpack.c.l.b16 %v100
    %v446 = vunpack.c.h.b16 %v100
    %v447 = vunpack.c.l.b16 %v101
    %v448 = vunpack.c.h.b16 %v101
    %v449 = vunpack.c.l.b16 %v102
    %v450 = vunpack.c.h.b16 %v102
    %v451 = vunpack.c.l.b16 %v103
    %v452 = vunpack.c.h.b16 %v103
    %v453 = vunpack.c.l.b16 %v104
    %v454 = vunpack.c.h.b16 %v104
    %v455 = vunpack.c.l.b16 %v105
    %v456 = vunpack.c.h.b16 %v105
    %v457 = vunpack.c.l.b16 %v106
    %v458 = vunpack.c.h.b16 %v106
    %v459 = vunpack.c.l.b16 %v107
    %v460 = vunpack.c.h.b16 %v107
    %v461 = vunpack.c.l.b16 %v108
    %v462 = vunpack.c.h.b16 %v108
    %v463 = vunpack.c.l.b16 %v109
    %v464 = vunpack.c.h.b16 %v109
    %v465 = vunpack.c.l.b16 %v110
    %v466 = vunpack.c.h.b16 %v110
    %v467 = vunpack.c.l.b16 %v111
    %v468 = vunpack.c.h.b16 %v111
    %v469 = vunpack.c.l.b16 %v112
    %v470 = vunpack.c.h.b16 %v112
    %v471 = vunpack.c.l.b16 %v113
    %v472 = vunpack.c.h.b16 %v113
    %v473 = vunpack.c.l.b16 %v114
    %v474 = vunpack.c.h.b16 %v114
    %v475 = vunpack.c.l.b16 %v115
    %v476 = vunpack.c.h.b16 %v115
    %v477 = vunpack.c.l.b16 %v116
    %v478 = vunpack.c.h.b16 %v116
    %v479 = vunpack.c.l.b16 %v117
    %v480 = vunpack.c.h.b16 %v117
    %v481 = vunpack.c.l.b16 %v118
    %v482 = vunpack.c.h.b16 %v118
    %v483 = vunpack.c.l.b16 %v119
    %v484 = vunpack.c.h.b16 %v119
    %v485 = vunpack.c.l.b16 %v120
    %v486 = vunpack.c.h.b16 %v120
    %v487 = vunpack.c.l.b16 %v121
    %v488 = vunpack.c.h.b16 %v121
    %v489 = vunpack.c.l.b16 %v122
    %v490 = vunpack.c.h.b16 %v122
    %v491 = vunpack.c.l.b16 %v123
    %v492 = vunpack.c.h.b16 %v123
    %v493 = vunpack.c.l.b16 %v124
    %v494 = vunpack.c.h.b16 %v124
    %v495 = vunpack.c.l.b16 %v125
    %v496 = vunpack.c.h.b16 %v125
    %v497 = vunpack.c.l.b16 %v126
    %v498 = vunpack.c.h.b16 %v126
    %v499 = vunpack.c.l.b16 %v127
    %v500 = vunpack.c.h.b16 %v127
    %v501 = vunpack.c.l.b16 %v128
    %v502 = vunpack.c.h.b16 %v128
    %v503 = vunpack.c.l.b16 %v129
    %v504 = vunpack.c.h.b16 %v129
    %v505 = vunpack.c.l.b16 %v130
    %v506 = vunpack.c.h.b16 %v130
    %v507 = vunpack.c.l.b16 %v131
    %v508 = vunpack.c.h.b16 %v131
    %v509 = vunpack.c.l.b16 %v132
    %v510 = vunpack.c.h.b16 %v132
    %v511 = vunpack.c.l.b16 %v133
    %v512 = vunpack.c.h.b16 %v133
    %v513 = vunpack.c.l.b16 %v134
    %v514 = vunpack.c.h.b16 %v134
    %v515 = vunpack.c.l.b16 %v135
    %v516 = vunpack.c.h.b16 %v135
    %v517 = vunpack.c.l.b16 %v136
    %v518 = vunpack.c.h.b16 %v136
    %v519 = vunpack.c.l.b16 %v137
    %v520 = vunpack.c.h.b16 %v137
    %v521 = vunpack.c.l.b16 %v138
    %v522 = vunpack.c.h.b16 %v138
    %v523 = vunpack.c.l.b16 %v139
    %v524 = vunpack.c.h.b16 %v139
    %v525 = vunpack.c.l.b16 %v140
    %v526 = vunpack.c.h.b16 %v140
    %v527 = vunpack.c.l.b16 %v141
    %v528 = vunpack.c.h.b16 %v141
    %v529 = vunpack.c.l.b16 %v142
    %v530 = vunpack.c.h.b16 %v142
    %v531 = vunpack.c.l.b16 %v143
    %v532 = vunpack.c.h.b16 %v143
    %v533 = vunpack.c.l.b16 %v144
    %v534 = vunpack.c.h.b16 %v144
    %v535 = vunpack.c.l.b16 %v145
    %v536 = vunpack.c.h.b16 %v145
    %v537 = vunpack.c.l.b16 %v146
    %v538 = vunpack.c.h.b16 %v146
    %v539 = vunpack.c.l.b16 %v147
    %v540 = vunpack.c.h.b16 %v147
    %v541 = vunpack.c.l.b16 %v148
    %v542 = vunpack.c.h.b16 %v148
    %v543 = vunpack.c.l.b16 %v149
    %v544 = vunpack.c.h.b16 %v149
    %v545 = vunpack.c.l.b16 %v150
    %v546 = vunpack.c.h.b16 %v150
    %v547 = vunpack.c.l.b16 %v151
    %v548 = vunpack.c.h.b16 %v151
    %v549 = vunpack.c.l.b16 %v152
    %v550 = vunpack.c.h.b16 %v152
    %v551 = vunpack.c.l.b16 %v153
    %v552 = vunpack.c.h.b16 %v153
    %v553 = vunpack.c.l.b16 %v154
    %v554 = vunpack.c.h.b16 %v154
    %v555 = vunpack.c.l.b16 %v155
    %v556 = vunpack.c.h.b16 %v155
    %v557 = vunpack.c.l.b16 %v156
    %v558 = vunpack.c.h.b16 %v156
    %v559 = vunpack.c.l.b16 %v157
    %v560 = vunpack.c.h.b16 %v157
    %v561 = vunpack.c.l.b16 %v158
    %v562 = vunpack.c.h.b16 %v158
    %v563 = vunpack.c.l.b16 %v159
    %v564 = vunpack.c.h.b16 %v159
    %v565 = vunpack.c.l.b16 %v160
    %v566 = vunpack.c.h.b16 %v160
    %v567 = vunpack.c.l.b16 %v161
    %v568 = vunpack.c.h.b16 %v161
    %v569 = vunpack.c.l.b16 %v162
    %v570 = vunpack.c.h.b16 %v162
    %v571 = vunpack.c.l.b16 %v163
    %v572 = vunpack.c.h.b16 %v163
    %v573 = vunpack.c.l.b16 %v164
    %v574 = vunpack.c.h.b16 %v164
    %v575 = vunpack.c.l.b16 %v165
    %v576 = vunpack.c.h.b16 %v165
    %v577 = vunpack.c.l.b16 %v166
    %v578 = vunpack.c.h.b16 %v166
    %v579 = vunpack.c.l.b16 %v167
    %v580 = vunpack.c.h.b16 %v167
    %v581 = vunpack.c.l.b16 %v168
    %v582 = vunpack.c.h.b16 %v168
    %v583 = vunpack.c.l.b16 %v169
    %v584 = vunpack.c.h.b16 %v169
    %v585 = vunpack.c.l.b16 %v170
    %v586 = vunpack.c.h.b16 %v170
    %v587 = vunpack.c.l.b16 %v171
    %v588 = vunpack.c.h.b16 %v171
    %v589 = vunpack.c.l.b16 %v172
    %v590 = vunpack.c.h.b16 %v172
    %v591 = vunpack.c.l.b16 %v173
    %v592 = vunpack.c.h.b16 %v173
    %v593 = vunpack.c.l.b16 %v174
    %v594 = vunpack.c.h.b16 %v174
    %v595 = vunpack.c.l.b16 %v175
    %v596 = vunpack.c.h.b16 %v175
    %v597 = vunpack.c.l.b16 %v176
    %v598 = vunpack.c.h.b16 %v176
    %v599 = vunpack.c.l.b16 %v177
    %v600 = vunpack.c.h.b16 %v177
    %v601 = vunpack.c.l.b16 %v178
    %v602 = vunpack.c.h.b16 %v178
    %v603 = vunpack.c.l.b16 %v179
    %v604 = vunpack.c.h.b16 %v179
    %v605 = vunpack.c.l.b16 %v180
    %v606 = vunpack.c.h.b16 %v180
    %v607 = vunpack.c.l.b16 %v181
    %v608 = vunpack.c.h.b16 %v181
    %v609 = vunpack.c.l.b16 %v182
    %v610 = vunpack.c.h.b16 %v182
    %v611 = vpack.c.b16 %v357, %v355
    %v612 = vpack.c.b16 %v358, %v356
    %v613 = vpack.c.b16 %v361, %v359
    %v614 = vpack.c.b16 %v362, %v360
    %v615 = vpack.c.b16 %v365, %v363
    %v616 = vpack.c.b16 %v366, %v364
    %v617 = vpack.c.b16 %v369, %v367
    %v618 = vpack.c.b16 %v370, %v368
    %v619 = vpack.c.b16 %v373, %v371
    %v620 = vpack.c.b16 %v374, %v372
    %v621 = vpack.c.b16 %v377, %v375
    %v622 = vpack.c.b16 %v378, %v376
    %v623 = vpack.c.b16 %v381, %v379
    %v624 = vpack.c.b16 %v382, %v380
    %v625 = vpack.c.b16 %v385, %v383
    %v626 = vpack.c.b16 %v386, %v384
    %v627 = vpack.c.b16 %v389, %v387
    %v628 = vpack.c.b16 %v390, %v388
    %v629 = vpack.c.b16 %v393, %v391
    %v630 = vpack.c.b16 %v394, %v392
    %v631 = vpack.c.b16 %v397, %v395
    %v632 = vpack.c.b16 %v398, %v396
    %v633 = vpack.c.b16 %v401, %v399
    %v634 = vpack.c.b16 %v402, %v400
    %v635 = vpack.c.b16 %v405, %v403
    %v636 = vpack.c.b16 %v406, %v404
    %v637 = vpack.c.b16 %v409, %v407
    %v638 = vpack.c.b16 %v410, %v408
    %v639 = vpack.c.b16 %v413, %v411
    %v640 = vpack.c.b16 %v414, %v412
    %v641 = vpack.c.b16 %v417, %v415
    %v642 = vpack.c.b16 %v418, %v416
    %v643 = vpack.c.b16 %v421, %v419
    %v644 = vpack.c.b16 %v422, %v420
    %v645 = vpack.c.b16 %v425, %v423
    %v646 = vpack.c.b16 %v426, %v424
    %v647 = vpack.c.b16 %v429, %v427
    %v648 = vpack.c.b16 %v430, %v428
    %v649 = vpack.c.b16 %v433, %v431
    %v650 = vpack.c.b16 %v434, %v432
    %v651 = vpack.c.b16 %v437, %v435
    %v652 = vpack.c.b16 %v438, %v436
    %v653 = vpack.c.b16 %v441, %v439
    %v654 = vpack.c.b16 %v442, %v440
    %v655 = vpack.c.b16 %v445, %v443
    %v656 = vpack.c.b16 %v446, %v444
    %v657 = vpack.c.b16 %v449, %v447
    %v658 = vpack.c.b16 %v450, %v448
    %v659 = vpack.c.b16 %v453, %v451
    %v660 = vpack.c.b16 %v454, %v452
    %v661 = vpack.c.b16 %v457, %v455
    %v662 = vpack.c.b16 %v458, %v456
    %v663 = vpack.c.b16 %v461, %v459
    %v664 = vpack.c.b16 %v462, %v460
    %v665 = vpack.c.b16 %v465, %v463
    %v666 = vpack.c.b16 %v466, %v464
    %v667 = vpack.c.b16 %v469, %v467
    %v668 = vpack.c.b16 %v470, %v468
    %v669 = vpack.c.b16 %v473, %v471
    %v670 = vpack.c.b16 %v474, %v472
    %v671 = vpack.c.b16 %v477, %v475
    %v672 = vpack.c.b16 %v478, %v476
    %v673 = vpack.c.b16 %v481, %v479
    %v674 = vpack.c.b16 %v482, %v480
    %v675 = vpack.c.b16 %v485, %v483
    %v676 = vpack.c.b16 %v486, %v484
    %v677 = vpack.c.b16 %v489, %v487
    %v678 = vpack.c.b16 %v490, %v488
    %v679 = vpack.c.b16 %v493, %v491
    %v680 = vpack.c.b16 %v494, %v492
    %v681 = vpack.c.b16 %v497, %v495
    %v682 = vpack.c.b16 %v498, %v496
    %v683 = vpack.c.b16 %v501, %v499
    %v684 = vpack.c.b16 %v502, %v500
    %v685 = vpack.c.b16 %v505, %v503
    %v686 = vpack.c.b16 %v506, %v504
    %v687 = vpack.c.b16 %v509, %v507
    %v688 = vpack.c.b16 %v510, %v508
    %v689 = vpack.c.b16 %v513, %v511
    %v690 = vpack.c.b16 %v514, %v512
    %v691 = vpack.c.b16 %v517, %v515
    %v692 = vpack.c.b16 %v518, %v516
    %v693 = vpack.c.b16 %v521, %v519
    %v694 = vpack.c.b16 %v522, %v520
    %v695 = vpack.c.b16 %v525, %v523
    %v696 = vpack.c.b16 %v526, %v524
    %v697 = vpack.c.b16 %v529, %v527
    %v698 = vpack.c.b16 %v530, %v528
    %v699 = vpack.c.b16 %v533, %v531
    %v700 = vpack.c.b16 %v534, %v532
    %v701 = vpack.c.b16 %v537, %v535
    %v702 = vpack.c.b16 %v538, %v536
    %v703 = vpack.c.b16 %v541, %v539
    %v704 = vpack.c.b16 %v542, %v540
    %v705 = vpack.c.b16 %v545, %v543
    %v706 = vpack.c.b16 %v546, %v544
    %v707 = vpack.c.b16 %v549, %v547
    %v708 = vpack.c.b16 %v550, %v548
    %v709 = vpack.c.b16 %v553, %v551
    %v710 = vpack.c.b16 %v554, %v552
    %v711 = vpack.c.b16 %v557, %v555
    %v712 = vpack.c.b16 %v558, %v556
    %v713 = vpack.c.b16 %v561, %v559
    %v714 = vpack.c.b16 %v562, %v560
    %v715 = vpack.c.b16 %v565, %v563
    %v716 = vpack.c.b16 %v566, %v564
    %v717 = vpack.c.b16 %v569, %v567
    %v718 = vpack.c.b16 %v570, %v568
    %v719 = vpack.c.b16 %v573, %v571
    %v720 = vpack.c.b16 %v574, %v572
    %v721 = vpack.c.b16 %v577, %v575
    %v722 = vpack.c.b16 %v578, %v576
    %v723 = vpack.c.b16 %v581, %v579
    %v724 = vpack.c.b16 %v582, %v580
    %v725 = vpack.c.b16 %v585, %v583
    %v726 = vpack.c.b16 %v586, %v584
    %v727 = vpack.c.b16 %v589, %v587
    %v728 = vpack.c.b16 %v590, %v588
    %v729 = vpack.c.b16 %v593, %v591
    %v730 = vpack.c.b16 %v594, %v592
    %v731 = vpack.c.b16 %v597, %v595
    %v732 = vpack.c.b16 %v598, %v596
    %v733 = vpack.c.b16 %v601, %v599
    %v734 = vpack.c.b16 %v602, %v600
    %v735 = vpack.c.b16 %v605, %v603
    %v736 = vpack.c.b16 %v606, %v604
    %v737 = vpack.c.b16 %v609, %v607
    %v738 = vpack.c.b16 %v610, %v608
    %867 = vmatprep.subr.bf16.mxu0 %v612
    %868 = vmatpush1.bf16.msra.mxu0 %v611
    %869 = vmatprep.subr.bf16.mxu0 %v614
    %870 = vmatpush1.bf16.msra.mxu0 %v613
    %871 = vmatprep.subr.bf16.mxu0 %v616
    %872 = vmatpush1.bf16.msra.mxu0 %v615
    %873 = vmatprep.subr.bf16.mxu0 %v618
    %874 = vmatpush1.bf16.msra.mxu0 %v617
    %875 = vmatprep.subr.bf16.mxu0 %v620
    %876 = vmatpush1.bf16.msra.mxu0 %v619
    %877 = vmatprep.subr.bf16.mxu0 %v622
    %878 = vmatpush1.bf16.msra.mxu0 %v621
    %879 = vmatprep.subr.bf16.mxu0 %v624
    %880 = vmatpush1.bf16.msra.mxu0 %v623
    %881 = vmatprep.subr.bf16.mxu0 %v626
    %882 = vmatpush1.bf16.msra.mxu0 %v625
    %883 = vmatprep.subr.bf16.mxu0 %v628
    %884 = vmatpush1.bf16.msra.mxu0 %v627
    %885 = vmatprep.subr.bf16.mxu0 %v630
    %886 = vmatpush1.bf16.msra.mxu0 %v629
    %887 = vmatprep.subr.bf16.mxu0 %v632
    %888 = vmatpush1.bf16.msra.mxu0 %v631
    %889 = vmatprep.subr.bf16.mxu0 %v634
    %890 = vmatpush1.bf16.msra.mxu0 %v633
    %891 = vmatprep.subr.bf16.mxu0 %v636
    %892 = vmatpush1.bf16.msra.mxu0 %v635
    %893 = vmatprep.subr.bf16.mxu0 %v638
    %894 = vmatpush1.bf16.msra.mxu0 %v637
    %895 = vmatprep.subr.bf16.mxu0 %v640
    %896 = vmatpush1.bf16.msra.mxu0 %v639
    %897 = vmatprep.subr.bf16.mxu0 %v642
    %898 = vmatpush1.bf16.msra.mxu0 %v641
    %899 = vmatprep.mubr.bf16.mxu0 %v193
    %900 = vmatmul.mubr.bf16.gmra.mrb[0].mxu0 %v192
    %v901 = vpop.f32.mrb[0].mxu0
    %v902 = vadd.f32 %v220, %v901
    %v903 = vpop.f32.mrb[0].mxu0
    %v904 = vadd.f32 %v224, %v903
    %v905 = vpop.f32.mrb[0].mxu0
    %v906 = vpop.f32.mrb[0].mxu0
    %907 = vdwg.mxu0
    %908 = vmatprep.subr.bf16.mxu0 %v644
    %909 = vmatpush1.bf16.msra.mxu0 %v643
    %910 = vmatprep.subr.bf16.mxu0 %v646
    %911 = vmatpush1.bf16.msra.mxu0 %v645
    %912 = vmatprep.subr.bf16.mxu0 %v648
    %913 = vmatpush1.bf16.msra.mxu0 %v647
    %914 = vmatprep.subr.bf16.mxu0 %v650
    %915 = vmatpush1.bf16.msra.mxu0 %v649
    %916 = vmatprep.subr.bf16.mxu0 %v652
    %917 = vmatpush1.bf16.msra.mxu0 %v651
    %918 = vmatprep.subr.bf16.mxu0 %v654
    %919 = vmatpush1.bf16.msra.mxu0 %v653
    %920 = vmatprep.subr.bf16.mxu0 %v656
    %921 = vmatpush1.bf16.msra.mxu0 %v655
    %922 = vmatprep.subr.bf16.mxu0 %v658
    %923 = vmatpush1.bf16.msra.mxu0 %v657
    %924 = vmatprep.subr.bf16.mxu0 %v660
    %925 = vmatpush1.bf16.msra.mxu0 %v659
    %926 = vmatprep.subr.bf16.mxu0 %v662
    %927 = vmatpush1.bf16.msra.mxu0 %v661
    %928 = vmatprep.subr.bf16.mxu0 %v664
    %929 = vmatpush1.bf16.msra.mxu0 %v663
    %930 = vmatprep.subr.bf16.mxu0 %v666
    %931 = vmatpush1.bf16.msra.mxu0 %v665
    %932 = vmatprep.subr.bf16.mxu0 %v668
    %933 = vmatpush1.bf16.msra.mxu0 %v667
    %934 = vmatprep.subr.bf16.mxu0 %v670
    %935 = vmatpush1.bf16.msra.mxu0 %v669
    %936 = vmatprep.subr.bf16.mxu0 %v672
    %937 = vmatpush1.bf16.msra.mxu0 %v671
    %938 = vmatprep.subr.bf16.mxu0 %v674
    %939 = vmatpush1.bf16.msra.mxu0 %v673
    %940 = vmatprep.mubr.bf16.mxu0 %v195
    %941 = vmatmul.mubr.bf16.gmra.mrb[0].mxu0 %v194
    %v942 = vpop.f32.mrb[0].mxu0
    %v943 = vadd.f32 %v902, %v942
    %v944 = vpop.f32.mrb[0].mxu0
    %v945 = vadd.f32 %v904, %v944
    %v946 = vpop.f32.mrb[0].mxu0
    %v947 = vpop.f32.mrb[0].mxu0
    %948 = vdwg.mxu0
    %949 = vmatprep.subr.bf16.mxu0 %v676
    %950 = vmatpush1.bf16.msra.mxu0 %v675
    %951 = vmatprep.subr.bf16.mxu0 %v678
    %952 = vmatpush1.bf16.msra.mxu0 %v677
    %953 = vmatprep.subr.bf16.mxu0 %v680
    %954 = vmatpush1.bf16.msra.mxu0 %v679
    %955 = vmatprep.subr.bf16.mxu0 %v682
    %956 = vmatpush1.bf16.msra.mxu0 %v681
    %957 = vmatprep.subr.bf16.mxu0 %v684
    %958 = vmatpush1.bf16.msra.mxu0 %v683
    %959 = vmatprep.subr.bf16.mxu0 %v686
    %960 = vmatpush1.bf16.msra.mxu0 %v685
    %961 = vmatprep.subr.bf16.mxu0 %v688
    %962 = vmatpush1.bf16.msra.mxu0 %v687
    %963 = vmatprep.subr.bf16.mxu0 %v690
    %964 = vmatpush1.bf16.msra.mxu0 %v689
    %965 = vmatprep.subr.bf16.mxu0 %v692
    %966 = vmatpush1.bf16.msra.mxu0 %v691
    %967 = vmatprep.subr.bf16.mxu0 %v694
    %968 = vmatpush1.bf16.msra.mxu0 %v693
    %969 = vmatprep.subr.bf16.mxu0 %v696
    %970 = vmatpush1.bf16.msra.mxu0 %v695
    %971 = vmatprep.subr.bf16.mxu0 %v698
    %972 = vmatpush1.bf16.msra.mxu0 %v697
    %973 = vmatprep.subr.bf16.mxu0 %v700
    %974 = vmatpush1.bf16.msra.mxu0 %v699
    %975 = vmatprep.subr.bf16.mxu0 %v702
    %976 = vmatpush1.bf16.msra.mxu0 %v701
    %977 = vmatprep.subr.bf16.mxu0 %v704
    %978 = vmatpush1.bf16.msra.mxu0 %v703
    %979 = vmatprep.subr.bf16.mxu0 %v706
    %980 = vmatpush1.bf16.msra.mxu0 %v705
    %981 = vmatprep.mubr.bf16.mxu0 %v197
    %982 = vmatmul.mubr.bf16.gmra.mrb[0].mxu0 %v196
    %v983 = vpop.f32.mrb[0].mxu0
    %v984 = vadd.f32 %v943, %v983
    %v985 = vpop.f32.mrb[0].mxu0
    %v986 = vadd.f32 %v945, %v985
    %v987 = vpop.f32.mrb[0].mxu0
    %v988 = vpop.f32.mrb[0].mxu0
    %989 = vdwg.mxu0
    %990 = vmatprep.subr.bf16.mxu0 %v708
    %991 = vmatpush1.bf16.msra.mxu0 %v707
    %992 = vmatprep.subr.bf16.mxu0 %v710
    %993 = vmatpush1.bf16.msra.mxu0 %v709
    %994 = vmatprep.subr.bf16.mxu0 %v712
    %995 = vmatpush1.bf16.msra.mxu0 %v711
    %996 = vmatprep.subr.bf16.mxu0 %v714
    %997 = vmatpush1.bf16.msra.mxu0 %v713
    %998 = vmatprep.subr.bf16.mxu0 %v716
    %999 = vmatpush1.bf16.msra.mxu0 %v715
    %1000 = vmatprep.subr.bf16.mxu0 %v718
    %1001 = vmatpush1.bf16.msra.mxu0 %v717
    %1002 = vmatprep.subr.bf16.mxu0 %v720
    %1003 = vmatpush1.bf16.msra.mxu0 %v719
    %1004 = vmatprep.subr.bf16.mxu0 %v722
    %1005 = vmatpush1.bf16.msra.mxu0 %v721
    %1006 = vmatprep.subr.bf16.mxu0 %v724
    %1007 = vmatpush1.bf16.msra.mxu0 %v723
    %1008 = vmatprep.subr.bf16.mxu0 %v726
    %1009 = vmatpush1.bf16.msra.mxu0 %v725
    %1010 = vmatprep.subr.bf16.mxu0 %v728
    %1011 = vmatpush1.bf16.msra.mxu0 %v727
    %1012 = vmatprep.subr.bf16.mxu0 %v730
    %1013 = vmatpush1.bf16.msra.mxu0 %v729
    %1014 = vmatprep.subr.bf16.mxu0 %v732
    %1015 = vmatpush1.bf16.msra.mxu0 %v731
    %1016 = vmatprep.subr.bf16.mxu0 %v734
    %1017 = vmatpush1.bf16.msra.mxu0 %v733
    %1018 = vmatprep.subr.bf16.mxu0 %v736
    %1019 = vmatpush1.bf16.msra.mxu0 %v735
    %1020 = vmatprep.subr.bf16.mxu0 %v738
    %1021 = vmatpush1.bf16.msra.mxu0 %v737
    %1022 = vmatprep.mubr.bf16.mxu0 %v199
    %1023 = vmatmul.mubr.bf16.gmra.mrb[0].mxu0 %v198
    %v1024 = vpop.f32.mrb[0].mxu0
    %v1025 = vadd.f32 %v984, %v1024
    %v1026 = vpop.f32.mrb[0].mxu0
    %v1027 = vadd.f32 %v986, %v1026
    %v1028 = vpop.f32.mrb[0].mxu0
    %v1029 = vpop.f32.mrb[0].mxu0
    %1030 = vdwg.mxu0
    %v1031 = vpack.c.bf16 %v1025, %v1025
    %v1032 = vpack.c.bf16 %v1027, %v1027
    %v1035 = vunpack.c.l.b16 %v1031
    %v1036 = vunpack.c.l.b16 %v1032
    %v1037 = vpack.c.b16 %v1036, %v1035
    %1039 = vst [vmem:[#allocation8] sm:$0xff] %v1037
    %1040 = vmatprep.subr.bf16.mxu0 %v612
    %1041 = vmatpush1.bf16.msra.mxu0 %v611
    %1042 = vmatprep.subr.bf16.mxu0 %v614
    %1043 = vmatpush1.bf16.msra.mxu0 %v613
    %1044 = vmatprep.subr.bf16.mxu0 %v616
    %1045 = vmatpush1.bf16.msra.mxu0 %v615
    %1046 = vmatprep.subr.bf16.mxu0 %v618
    %1047 = vmatpush1.bf16.msra.mxu0 %v617
    %1048 = vmatprep.subr.bf16.mxu0 %v620
    %1049 = vmatpush1.bf16.msra.mxu0 %v619
    %1050 = vmatprep.subr.bf16.mxu0 %v622
    %1051 = vmatpush1.bf16.msra.mxu0 %v621
    %1052 = vmatprep.subr.bf16.mxu0 %v624
    %1053 = vmatpush1.bf16.msra.mxu0 %v623
    %1054 = vmatprep.subr.bf16.mxu0 %v626
    %1055 = vmatpush1.bf16.msra.mxu0 %v625
    %1056 = vmatprep.subr.bf16.mxu0 %v628
    %1057 = vmatpush1.bf16.msra.mxu0 %v627
    %1058 = vmatprep.subr.bf16.mxu0 %v630
    %1059 = vmatpush1.bf16.msra.mxu0 %v629
    %1060 = vmatprep.subr.bf16.mxu0 %v632
    %1061 = vmatpush1.bf16.msra.mxu0 %v631
    %1062 = vmatprep.subr.bf16.mxu0 %v634
    %1063 = vmatpush1.bf16.msra.mxu0 %v633
    %1064 = vmatprep.subr.bf16.mxu0 %v636
    %1065 = vmatpush1.bf16.msra.mxu0 %v635
    %1066 = vmatprep.subr.bf16.mxu0 %v638
    %1067 = vmatpush1.bf16.msra.mxu0 %v637
    %1068 = vmatprep.subr.bf16.mxu0 %v640
    %1069 = vmatpush1.bf16.msra.mxu0 %v639
    %1070 = vmatprep.subr.bf16.mxu0 %v642
    %1071 = vmatpush1.bf16.msra.mxu0 %v641
    %1072 = vmatprep.mubr.bf16.mxu0 %v209
    %1073 = vmatmul.mubr.bf16.gmra.mrb[0].mxu0 %v208
    %v1074 = vpop.f32.mrb[0].mxu0
    %v1075 = vadd.f32 %v220, %v1074
    %v1076 = vpop.f32.mrb[0].mxu0
    %v1077 = vadd.f32 %v224, %v1076
    %v1078 = vpop.f32.mrb[0].mxu0
    %v1079 = vpop.f32.mrb[0].mxu0
    %1080 = vdwg.mxu0
    %1081 = vmatprep.subr.bf16.mxu0 %v644
    %1082 = vmatpush1.bf16.msra.mxu0 %v643
    %1083 = vmatprep.subr.bf16.mxu0 %v646
    %1084 = vmatpush1.bf16.msra.mxu0 %v645
    %1085 = vmatprep.subr.bf16.mxu0 %v648
    %1086 = vmatpush1.bf16.msra.mxu0 %v647
    %1087 = vmatprep.subr.bf16.mxu0 %v650
    %1088 = vmatpush1.bf16.msra.mxu0 %v649
    %1089 = vmatprep.subr.bf16.mxu0 %v652
    %1090 = vmatpush1.bf16.msra.mxu0 %v651
    %1091 = vmatprep.subr.bf16.mxu0 %v654
    %1092 = vmatpush1.bf16.msra.mxu0 %v653
    %1093 = vmatprep.subr.bf16.mxu0 %v656
    %1094 = vmatpush1.bf16.msra.mxu0 %v655
    %1095 = vmatprep.subr.bf16.mxu0 %v658
    %1096 = vmatpush1.bf16.msra.mxu0 %v657
    %1097 = vmatprep.subr.bf16.mxu0 %v660
    %1098 = vmatpush1.bf16.msra.mxu0 %v659
    %1099 = vmatprep.subr.bf16.mxu0 %v662
    %1100 = vmatpush1.bf16.msra.mxu0 %v661
    %1101 = vmatprep.subr.bf16.mxu0 %v664
    %1102 = vmatpush1.bf16.msra.mxu0 %v663
    %1103 = vmatprep.subr.bf16.mxu0 %v666
    %1104 = vmatpush1.bf16.msra.mxu0 %v665
    %1105 = vmatprep.subr.bf16.mxu0 %v668
    %1106 = vmatpush1.bf16.msra.mxu0 %v667
    %1107 = vmatprep.subr.bf16.mxu0 %v670
    %1108 = vmatpush1.bf16.msra.mxu0 %v669
    %1109 = vmatprep.subr.bf16.mxu0 %v672
    %1110 = vmatpush1.bf16.msra.mxu0 %v671
    %1111 = vmatprep.subr.bf16.mxu0 %v674
    %1112 = vmatpush1.bf16.msra.mxu0 %v673
    %1113 = vmatprep.mubr.bf16.mxu0 %v211
    %1114 = vmatmul.mubr.bf16.gmra.mrb[0].mxu0 %v210
    %v1115 = vpop.f32.mrb[0].mxu0
    %v1116 = vadd.f32 %v1075, %v1115
    %v1117 = vpop.f32.mrb[0].mxu0
    %v1118 = vadd.f32 %v1077, %v1117
    %v1119 = vpop.f32.mrb[0].mxu0
    %v1120 = vpop.f32.mrb[0].mxu0
    %1121 = vdwg.mxu0
    %1122 = vmatprep.subr.bf16.mxu0 %v676
    %1123 = vmatpush1.bf16.msra.mxu0 %v675
    %1124 = vmatprep.subr.bf16.mxu0 %v678
    %1125 = vmatpush1.bf16.msra.mxu0 %v677
    %1126 = vmatprep.subr.bf16.mxu0 %v680
    %1127 = vmatpush1.bf16.msra.mxu0 %v679
    %1128 = vmatprep.subr.bf16.mxu0 %v682
    %1129 = vmatpush1.bf16.msra.mxu0 %v681
    %1130 = vmatprep.subr.bf16.mxu0 %v684
    %1131 = vmatpush1.bf16.msra.mxu0 %v683
    %1132 = vmatprep.subr.bf16.mxu0 %v686
    %1133 = vmatpush1.bf16.msra.mxu0 %v685
    %1134 = vmatprep.subr.bf16.mxu0 %v688
    %1135 = vmatpush1.bf16.msra.mxu0 %v687
    %1136 = vmatprep.subr.bf16.mxu0 %v690
    %1137 = vmatpush1.bf16.msra.mxu0 %v689
    %1138 = vmatprep.subr.bf16.mxu0 %v692
    %1139 = vmatpush1.bf16.msra.mxu0 %v691
    %1140 = vmatprep.subr.bf16.mxu0 %v694
    %1141 = vmatpush1.bf16.msra.mxu0 %v693
    %1142 = vmatprep.subr.bf16.mxu0 %v696
    %1143 = vmatpush1.bf16.msra.mxu0 %v695
    %1144 = vmatprep.subr.bf16.mxu0 %v698
    %1145 = vmatpush1.bf16.msra.mxu0 %v697
    %1146 = vmatprep.subr.bf16.mxu0 %v700
    %1147 = vmatpush1.bf16.msra.mxu0 %v699
    %1148 = vmatprep.subr.bf16.mxu0 %v702
    %1149 = vmatpush1.bf16.msra.mxu0 %v701
    %1150 = vmatprep.subr.bf16.mxu0 %v704
    %1151 = vmatpush1.bf16.msra.mxu0 %v703
    %1152 = vmatprep.subr.bf16.mxu0 %v706
    %1153 = vmatpush1.bf16.msra.mxu0 %v705
    %1154 = vmatprep.mubr.bf16.mxu0 %v213
    %1155 = vmatmul.mubr.bf16.gmra.mrb[0].mxu0 %v212
    %v1156 = vpop.f32.mrb[0].mxu0
    %v1157 = vadd.f32 %v1116, %v1156
    %v1158 = vpop.f32.mrb[0].mxu0
    %v1159 = vadd.f32 %v1118, %v1158
    %v1160 = vpop.f32.mrb[0].mxu0
    %v1161 = vpop.f32.mrb[0].mxu0
    %1162 = vdwg.mxu0
    %1163 = vmatprep.subr.bf16.mxu0 %v708
    %1164 = vmatpush1.bf16.msra.mxu0 %v707
    %1165 = vmatprep.subr.bf16.mxu0 %v710
    %1166 = vmatpush1.bf16.msra.mxu0 %v709
    %1167 = vmatprep.subr.bf16.mxu0 %v712
    %1168 = vmatpush1.bf16.msra.mxu0 %v711
    %1169 = vmatprep.subr.bf16.mxu0 %v714
    %1170 = vmatpush1.bf16.msra.mxu0 %v713
    %1171 = vmatprep.subr.bf16.mxu0 %v716
    %1172 = vmatpush1.bf16.msra.mxu0 %v715
    %1173 = vmatprep.subr.bf16.mxu0 %v718
    %1174 = vmatpush1.bf16.msra.mxu0 %v717
    %1175 = vmatprep.subr.bf16.mxu0 %v720
    %1176 = vmatpush1.bf16.msra.mxu0 %v719
    %1177 = vmatprep.subr.bf16.mxu0 %v722
    %1178 = vmatpush1.bf16.msra.mxu0 %v721
    %1179 = vmatprep.subr.bf16.mxu0 %v724
    %1180 = vmatpush1.bf16.msra.mxu0 %v723
    %1181 = vmatprep.subr.bf16.mxu0 %v726
    %1182 = vmatpush1.bf16.msra.mxu0 %v725
    %1183 = vmatprep.subr.bf16.mxu0 %v728
    %1184 = vmatpush1.bf16.msra.mxu0 %v727
    %1185 = vmatprep.subr.bf16.mxu0 %v730
    %1186 = vmatpush1.bf16.msra.mxu0 %v729
    %1187 = vmatprep.subr.bf16.mxu0 %v732
    %1188 = vmatpush1.bf16.msra.mxu0 %v731
    %1189 = vmatprep.subr.bf16.mxu0 %v734
    %1190 = vmatpush1.bf16.msra.mxu0 %v733
    %1191 = vmatprep.subr.bf16.mxu0 %v736
    %1192 = vmatpush1.bf16.msra.mxu0 %v735
    %1193 = vmatprep.subr.bf16.mxu0 %v738
    %1194 = vmatpush1.bf16.msra.mxu0 %v737
    %1195 = vmatprep.mubr.bf16.mxu0 %v215
    %1196 = vmatmul.mubr.bf16.gmra.mrb[0].mxu0 %v214
    %v1197 = vpop.f32.mrb[0].mxu0
    %v1198 = vadd.f32 %v1157, %v1197
    %v1199 = vpop.f32.mrb[0].mxu0
    %v1200 = vadd.f32 %v1159, %v1199
    %v1201 = vpop.f32.mrb[0].mxu0
    %v1202 = vpop.f32.mrb[0].mxu0
    %1203 = vdwg.mxu0
    %v1204 = vpack.c.bf16 %v1198, %v1198
    %v1205 = vpack.c.bf16 %v1200, %v1200
    %v1208 = vunpack.c.l.b16 %v1204
    %v1209 = vunpack.c.l.b16 %v1205
    %v1210 = vpack.c.b16 %v1209, %v1208
    %s1212 = scalar_lea.vmem [#allocation8], 8
    %1213 = vst [vmem:[%s1212] sm:$0xff] %v1210
    // Predicated region
    $region30: #{tpu_custom_call.1} parent=1 // pred_check
      _
    $region31: #{tpu_custom_call.1} parent=1 // pred_check_branch
      %1215 = sbr.rel (0) target = $region33
    $region32: #{tpu_custom_call.1} parent=1 // pred_region
      %s1217 = ssub.s32 256, 256
      %1218 = vsyncadd [#allocation4], %s1217
      %s1219 = sshll.u32 [#allocation8], 4
      %s1220 = int_to_ptr.vmem [resolvable:$true] %s1219
      %1225 = dma.vmem_to_hbm [thread:$0]  %s1220, 256, %s4, [#allocation4], 128, 128, 8
    $region33: #{tpu_custom_call.1} parent=1 // pred_fallthru
      _
    // Predicated region
    $region34: #{tpu_custom_call.1} parent=1 // pred_check
      _
    $region35: #{tpu_custom_call.1} parent=1 // pred_check_branch
      %1227 = sbr.rel (0) target = $region37
    $region36: #{tpu_custom_call.1} parent=1 // pred_region
      %1228 = dma.done [#allocation4], 256
    $region37: #{tpu_custom_call.1} parent=1 // pred_fallthru
      _
    %1229 = vsyncpa [#allocation3], 1
    %1230 = vsyncpa [#allocation6], 1
    %1231 = vsyncpa [#allocation4], 1

</llo_original>
